<compile_context>
chip_gen: v6e
topology: v6e:2x2x1
jax: 0.10.0
libtpu: 0.0.40
codegen_flags: <defaults>
</compile_context>

<pallas_src>
import jax
import jax.numpy as jnp
from jax.experimental import pallas as pl
from jax.experimental.pallas import tpu as pltpu

KSIZE = 5
PAD = 2
EPS = 1e-5


# --------------------------------------------------------------------------
# Kernels
# --------------------------------------------------------------------------
def _conv_relu_stats_kernel(x_ref, w_ref, b_ref, pv_ref, h_ref, st_ref, pad_ref):
    """'same' Conv1d(k=5) -> (bias in accumulator) -> ReLU for one batch tile,
    plus one-pass BatchNorm statistics (per-channel sum / sum-sq) of the output.

    Any upstream BatchNorm is folded into (w_ref, b_ref) by the wrapper;
    pv_ref is the per-channel pad value (-shift/scale, 0 for stage 1) that
    keeps that fold exact at the zero-padded edges."""
    tb, cin, length = x_ref.shape
    cout = h_ref.shape[1]

    # Single padded copy along L in a VMEM scratch (only copy made).  Edges are
    # rewritten every step: scratch is per-TensorCore under "parallel" grid
    # sharding, so gating on program_id==0 would be unsafe on v7x megacore.
    edge = jnp.broadcast_to(pv_ref[...][None, :, :], (tb, cin, PAD))
    pad_ref[:, :, 0:PAD] = edge
    pad_ref[:, :, PAD + length:PAD + length + PAD] = edge
    pad_ref[:, :, PAD:PAD + length] = x_ref[...]
    xp = pad_ref[...]                                     # (tb, cin, L + 4)

    # k=5 conv as cin*K broadcasted VPU multiply-adds over (tb, cout, L) tiles
    # (L on lanes, cout on sublanes -> lane-dense for realistic L).  The
    # accumulator starts from the broadcast bias (saves one full-tile pass).
    # At cin, cout <= 8 this static unroll does not spill; for much larger
    # channel counts switch the ci loop to lax.fori_loop(..., unroll=True).
    w = w_ref[...]                                        # (cin*K, cout, 1)
    acc = jnp.broadcast_to(b_ref[...][None, :, :], (tb, cout, length))
    for ci in range(cin):
        for k in range(KSIZE):
            acc = acc + (w[ci * KSIZE + k][None, :, :] *
                         xp[:, ci:ci + 1, k:k + length])
    h = jnp.maximum(acc, 0.0)
    h_ref[...] = h

    # One-pass BatchNorm statistics for this tile: per-channel sum / sum-sq.
    s1 = jnp.sum(jnp.sum(h, axis=2, keepdims=True), axis=0, keepdims=True)
    s2 = jnp.sum(jnp.sum(h * h, axis=2, keepdims=True), axis=0, keepdims=True)
    st_ref[:, :, 0:1] = s1
    st_ref[:, :, 1:2] = s2


def _make_norm_window_max_kernel(pool):
    """BN2 per-channel affine + sliding window max, all lane-dense, one dense
    full-width store per tile.  Emits m[:, :, l] = max(hn[:, :, l : l + pool]);
    the stride-`pool` decimation happens as an XLA slice in the wrapper."""
    def kernel(h_ref, sc_ref, sh_ref, m_ref, buf_ref):
        tb, cout, length = h_ref.shape
        sc = sc_ref[...][None, :, :]
        sh = sh_ref[...][None, :, :]
        hn = h_ref[...] * sc + sh
        # Stage hn once in VMEM with a (pool-1)-wide tail so every shifted
        # window read is an equal-length contiguous lane slice.  The tail only
        # feeds window positions that the decimation discards (L % pool == 0).
        buf_ref[:, :, 0:length] = hn
        if pool > 1:
            buf_ref[:, :, length:length + pool - 1] = jnp.zeros(
                (tb, cout, pool - 1), jnp.float32)
        m = hn
        for s in range(1, pool):
            m = jnp.maximum(m, buf_ref[:, :, s:s + length])
        m_ref[...] = m
    return kernel


# --------------------------------------------------------------------------
# Wrapper helpers
# --------------------------------------------------------------------------
def _vmem_limit_bytes():
    """~3/4 of physical VMEM, capped at 96 MiB (=> ~96 MiB on 128-MiB v5e/v6e,
    ~48 MiB on 64-MiB v7x); conservative 48 MiB if the query fails."""
    phys = 64 * 1024 * 1024
    try:
        info = pltpu.get_tpu_info()
        for attr in ("vmem_capacity_bytes", "vmem_size_bytes", "vmem_bytes"):
            v = getattr(info, attr, None)
            if v:
                phys = int(v)
                break
    except Exception:
        pass
    return int(min(phys * 3 // 4, 96 * 1024 * 1024))


def _batch_tile(batch, cin, cout, length, vmem_limit):
    """Largest divisor of `batch` whose conv-stage working set (2x double-
    buffered input, 2x output, pad scratch, ~2 tile-sized temporaries) lands at
    ~65% of the scoped VMEM limit.  Prefers >=2 grid steps (v7x megacore) when
    the halved tile is still large."""
    row = 4 * (2 * cin * length + 4 * cout * length + cin * (length + 2 * PAD))
    cap = max(1, int(vmem_limit * 0.65) // max(row, 1))
    tb = min(batch, cap)
    while batch % tb:
        tb -= 1
    # TODO(synk): for awkward batch sizes this divisor search degrades to small
    # tiles; pad the batch (with stats-count bookkeeping) instead.
    if tb == batch and batch % 2 == 0 and (batch // 2) * row >= (4 << 20):
        tb = batch // 2            # feed v7x's second TensorCore
    return tb


def _bn_scale_shift(stats, gamma, beta, count):
    """Fold training-mode BatchNorm1d (biased var, eps=1e-5) into per-channel
    scale/shift from streamed per-tile [sum, sum_sq].  O(C) work only."""
    s = jnp.sum(stats, axis=0)                            # (C, 2)
    mean = s[:, 0] / count
    var = jnp.maximum(s[:, 1] / count - mean * mean, 0.0)  # biased, clamped
    scale = gamma.astype(jnp.float32) * jax.lax.rsqrt(var + EPS)
    shift = beta.astype(jnp.float32) - mean * scale
    return scale, shift                                   # (C,), (C,)


# --------------------------------------------------------------------------
# Forward
# --------------------------------------------------------------------------
def down_forward(x_ncl, params, pool):
    """x_ncl: (B, Cin, L) as in PyTorch Conv1d.  Returns (B, Cout, L // pool)."""
    w1, b1, g1, be1, w2, b2, g2, be2 = params
    B, Cin, L = x_ncl.shape
    Cout = w1.shape[0]
    assert L % pool == 0
    Lout = L // pool
    f32 = jnp.float32

    vmem_limit = _vmem_limit_bytes()
    TB = _batch_tile(B, max(Cin, Cout), Cout, L, vmem_limit)
    nb = B // TB

    cparams = pltpu.CompilerParams(
        dimension_semantics=("parallel",),        # independent batch tiles
        vmem_limit_bytes=vmem_limit,
    )

    def to_kernel_layout(w, b):
        # (Cout, Cin, K) -> (Cin*K, Cout, 1): one (Cout, 1) weight column per
        # (cin, k) tap; bias as (Cout, 1).
        wk = jnp.transpose(w, (1, 2, 0)).reshape(-1, Cout)[:, :, None].astype(f32)
        return wk, b.reshape(Cout, 1).astype(f32)

    def conv_stage(inp, wr, bc, pv):
        cin = inp.shape[1]
        cost = pl.CostEstimate(
            flops=2 * B * L * Cout * cin * KSIZE + 3 * B * L * Cout,
            transcendentals=0,
            bytes_accessed=4 * (B * cin * L + B * Cout * L + int(wr.size)
                                + 2 * Cout + cin + 2 * nb * Cout),
        )
        return pl.pallas_call(
            _conv_relu_stats_kernel,
            grid=(nb,),
            in_specs=[
                pl.BlockSpec((TB, cin, L), lambda i: (i, 0, 0)),
                pl.BlockSpec((cin * KSIZE, Cout, 1), lambda i: (0, 0, 0)),
                pl.BlockSpec((Cout, 1), lambda i: (0, 0)),
                pl.BlockSpec((cin, 1), lambda i: (0, 0)),
            ],
            out_specs=[
                pl.BlockSpec((TB, Cout, L), lambda i: (i, 0, 0)),
                pl.BlockSpec((1, Cout, 2), lambda i: (i, 0, 0)),
            ],
            out_shape=[
                jax.ShapeDtypeStruct((B, Cout, L), f32),
                jax.ShapeDtypeStruct((nb, Cout, 2), f32),
            ],
            scratch_shapes=[pltpu.VMEM((TB, cin, L + 2 * PAD), f32)],
            compiler_params=cparams,
            cost_estimate=cost,
        )(inp, wr, bc, pv)

    # Stage 1: conv1 + bias + ReLU (zero-padded input), streaming BN1 stats.
    w1r, b1c = to_kernel_layout(w1.astype(f32), b1)
    pv1 = jnp.zeros((Cin, 1), f32)
    h1, st1 = conv_stage(x_ncl.astype(f32), w1r, b1c, pv1)
    sc1, sh1 = _bn_scale_shift(st1, g1, be1, B * L)

    # Stage 2: BN1 folded into conv2 (w2' = w2*scale1 over input channels,
    # b2' = b2 + sum_{i,k} w2*shift1; per-channel pad value -shift1/scale1 keeps
    # the fold exact at the padded edges), then ReLU + streaming BN2 stats.
    w2f = w2.astype(f32) * sc1[None, :, None]
    b2f = b2.astype(f32) + jnp.einsum("oik,i->o", w2.astype(f32), sh1)
    pv2 = jnp.where(sc1 != 0, -sh1 / jnp.where(sc1 != 0, sc1, 1.0), 0.0)
    w2r, b2c = to_kernel_layout(w2f, b2f)
    h2, st2 = conv_stage(h1, w2r, b2c, pv2.reshape(Cout, 1).astype(f32))
    sc2, sh2 = _bn_scale_shift(st2, g2, be2, B * L)

    # Stage 3: BN2 affine + sliding window max (dense ops, one dense store per
    # tile), then the stride-`pool` lane decimation as a trivial XLA slice.
    # TODO(synk): move the decimation in-kernel (lane-strided reads or an
    # L-tiled grid) once strided lane loads lower cleanly, to drop the extra
    # (pool-1)/pool of stage-3 output traffic.
    wm = pl.pallas_call(
        _make_norm_window_max_kernel(pool),
        grid=(nb,),
        in_specs=[
            pl.BlockSpec((TB, Cout, L), lambda i: (i, 0, 0)),
            pl.BlockSpec((Cout, 1), lambda i: (0, 0)),
            pl.BlockSpec((Cout, 1), lambda i: (0, 0)),
        ],
        out_specs=pl.BlockSpec((TB, Cout, L), lambda i: (i, 0, 0)),
        out_shape=jax.ShapeDtypeStruct((B, Cout, L), f32),
        scratch_shapes=[pltpu.VMEM((TB, Cout, L + pool - 1), f32)],
        compiler_params=cparams,
        cost_estimate=pl.CostEstimate(
            flops=(pool + 2) * B * Cout * L, transcendentals=0,
            bytes_accessed=4 * (2 * B * Cout * L + 2 * Cout)),
    )(h2, sc2.reshape(Cout, 1), sh2.reshape(Cout, 1))
    out = wm[:, :, ::pool]
    assert out.shape == (B, Cout, Lout)
    return out


# --------------------------------------------------------------------------
# Pure-JAX reference (same math as PyTorch training-mode forward)
# --------------------------------------------------------------------------
def down_reference(x_ncl, params, pool):
    w1, b1, g1, be1, w2, b2, g2, be2 = params

    def conv(x, w, b):
        y = jax.lax.conv_general_dilated(
            x, w, window_strides=(1,), padding=((PAD, PAD),),
            dimension_numbers=("NCH", "OIH", "NCH"))
        return y + b[None, :, None]

    def bn(x, g, be):
        mean = x.mean(axis=(0, 2), keepdims=True)
        var = ((x - mean) ** 2).mean(axis=(0, 2), keepdims=True)
        return (x - mean) * jax.lax.rsqrt(var + EPS) * g[None, :, None] + be[None, :, None]

    h = bn(jnp.maximum(conv(x_ncl, w1, b1), 0.0), g1, be1)
    h = bn(jnp.maximum(conv(h, w2, b2), 0.0), g2, be2)
    B, C, L = h.shape
    return h.reshape(B, C, L // pool, pool).max(axis=3)


if __name__ == "__main__":
    B, Cin, Cout, L, POOL = 2, 4, 8, 16, 2

    key = jax.random.PRNGKey(0)
    kw1, kb1, kw2, kb2, kg1, kbe1, kg2, kbe2, kx = jax.random.split(key, 9)
    # Deterministic synthetic parameters (shapes from nn.Conv1d / nn.BatchNorm1d).
    w1 = 0.1 * jax.random.normal(kw1, (Cout, Cin, KSIZE), jnp.float32)
    b1 = 0.05 * jax.random.normal(kb1, (Cout,), jnp.float32)
    w2 = 0.1 * jax.random.normal(kw2, (Cout, Cout, KSIZE), jnp.float32)
    b2 = 0.05 * jax.random.normal(kb2, (Cout,), jnp.float32)
    g1 = 1.0 + 0.1 * jax.random.normal(kg1, (Cout,), jnp.float32)
    be1 = 0.1 * jax.random.normal(kbe1, (Cout,), jnp.float32)
    g2 = 1.0 + 0.1 * jax.random.normal(kg2, (Cout,), jnp.float32)
    be2 = 0.1 * jax.random.normal(kbe2, (Cout,), jnp.float32)
    params = (w1, b1, g1, be1, w2, b2, g2, be2)

    x = jax.random.normal(kx, (B, Cin, L), jnp.float32)       # PyTorch NCL input

    out = jax.block_until_ready(down_forward(x, params, POOL))
    ref = jax.block_until_ready(down_reference(x, params, POOL))

    assert out.shape == (B, Cout, L // POOL), out.shape
    max_err = float(jnp.abs(out - ref).max())
    assert jnp.allclose(out, ref, rtol=1e-4, atol=1e-4), max_err
    print("KERNEL_OK")
</pallas_src>

<mosaic_0001>
module attributes {stable_mosaic.version = 11 : i64} {
  func.func @_conv_relu_stats_kernel(%arg0: i32, %arg1: memref<2x4x16xf32, #tpu.memory_space<vmem>>, %arg2: memref<20x8x1xf32, #tpu.memory_space<vmem>>, %arg3: memref<8x1xf32, #tpu.memory_space<vmem>>, %arg4: memref<4x1xf32, #tpu.memory_space<vmem>>, %arg5: memref<2x8x16xf32, #tpu.memory_space<vmem>>, %arg6: memref<1x8x2xf32, #tpu.memory_space<vmem>>, %arg7: memref<2x4x20xf32, #tpu.memory_space<vmem>>) attributes {dimension_semantics = [#tpu.dimension_semantics<parallel>], iteration_bounds = array<i64: 1>, scalar_prefetch = 0 : i64, scratch_operands = 1 : i64, tpu.core_type = #tpu.core_type<tc>, window_params = [{transform_indices = @transform_0, window_bounds = array<i64: 2, 4, 16>}, {pipeline_mode = #tpu.pipeline_mode<synchronous>, transform_indices = @transform_1, window_bounds = array<i64: 20, 8, 1>}, {pipeline_mode = #tpu.pipeline_mode<synchronous>, transform_indices = @transform_2, window_bounds = array<i64: 8, 1>}, {pipeline_mode = #tpu.pipeline_mode<synchronous>, transform_indices = @transform_3, window_bounds = array<i64: 4, 1>}, {transform_indices = @transform_4, window_bounds = array<i64: 2, 8, 16>}, {transform_indices = @transform_5, window_bounds = array<i64: 1, 8, 2>}]} {
    %c0 = arith.constant 0 : index
    %c0_0 = arith.constant 0 : index
    %0 = vector.load %arg4[%c0, %c0_0] : memref<4x1xf32, #tpu.memory_space<vmem>>, vector<4x1xf32>
    %1 = vector.shape_cast %0 : vector<4x1xf32> to vector<1x4x1xf32>
    %2 = vector.shape_cast %1 : vector<1x4x1xf32> to vector<1x4x1xf32>
    %3 = vector.broadcast %2 : vector<1x4x1xf32> to vector<2x4x2xf32>
    %c0_1 = arith.constant 0 : index
    %c0_2 = arith.constant 0 : index
    %c0_3 = arith.constant 0 : index
    %4 = vector.load %arg7[%c0_1, %c0_2, %c0_3] : memref<2x4x20xf32, #tpu.memory_space<vmem>>, vector<2x4x2xf32>
    tpu.vector_store %arg7[%c0_1, %c0_2, %c0_3], %3 {strides = array<i32>} : memref<2x4x20xf32, #tpu.memory_space<vmem>>, vector<2x4x2xf32>,
    %c0_4 = arith.constant 0 : index
    %c0_5 = arith.constant 0 : index
    %c18 = arith.constant 18 : index
    %5 = vector.load %arg7[%c0_4, %c0_5, %c18] : memref<2x4x20xf32, #tpu.memory_space<vmem>>, vector<2x4x2xf32>
    tpu.vector_store %arg7[%c0_4, %c0_5, %c18], %3 {strides = array<i32>} : memref<2x4x20xf32, #tpu.memory_space<vmem>>, vector<2x4x2xf32>,
    %c0_6 = arith.constant 0 : index
    %c0_7 = arith.constant 0 : index
    %c0_8 = arith.constant 0 : index
    %6 = vector.load %arg1[%c0_6, %c0_7, %c0_8] : memref<2x4x16xf32, #tpu.memory_space<vmem>>, vector<2x4x16xf32>
    %c0_9 = arith.constant 0 : index
    %c0_10 = arith.constant 0 : index
    %c2 = arith.constant 2 : index
    %7 = vector.load %arg7[%c0_9, %c0_10, %c2] : memref<2x4x20xf32, #tpu.memory_space<vmem>>, vector<2x4x16xf32>
    tpu.vector_store %arg7[%c0_9, %c0_10, %c2], %6 {strides = array<i32>} : memref<2x4x20xf32, #tpu.memory_space<vmem>>, vector<2x4x16xf32>,
    %c0_11 = arith.constant 0 : index
    %c0_12 = arith.constant 0 : index
    %c0_13 = arith.constant 0 : index
    %8 = vector.load %arg7[%c0_11, %c0_12, %c0_13] : memref<2x4x20xf32, #tpu.memory_space<vmem>>, vector<2x4x20xf32>
    %c0_14 = arith.constant 0 : index
    %c0_15 = arith.constant 0 : index
    %c0_16 = arith.constant 0 : index
    %9 = vector.load %arg2[%c0_14, %c0_15, %c0_16] : memref<20x8x1xf32, #tpu.memory_space<vmem>>, vector<20x8x1xf32>
    %c0_17 = arith.constant 0 : index
    %c0_18 = arith.constant 0 : index
    %10 = vector.load %arg3[%c0_17, %c0_18] : memref<8x1xf32, #tpu.memory_space<vmem>>, vector<8x1xf32>
    %11 = vector.shape_cast %10 : vector<8x1xf32> to vector<1x8x1xf32>
    %12 = vector.shape_cast %11 : vector<1x8x1xf32> to vector<1x8x1xf32>
    %13 = vector.broadcast %12 : vector<1x8x1xf32> to vector<2x8x16xf32>
    %14 = vector.extract_strided_slice %9 {offsets = [0, 0, 0], sizes = [1, 8, 1], strides = [1, 1, 1]} : vector<20x8x1xf32> to vector<1x8x1xf32>
    %15 = vector.shape_cast %14 : vector<1x8x1xf32> to vector<8x1xf32>
    %16 = vector.shape_cast %15 : vector<8x1xf32> to vector<1x8x1xf32>
    %17 = vector.extract_strided_slice %8 {offsets = [0, 0, 0], sizes = [2, 1, 16], strides = [1, 1, 1]} : vector<2x4x20xf32> to vector<2x1x16xf32>
    %18 = vector.broadcast %16 : vector<1x8x1xf32> to vector<2x8x16xf32>
    %19 = vector.broadcast %17 : vector<2x1x16xf32> to vector<2x8x16xf32>
    %20 = arith.mulf %18, %19 : vector<2x8x16xf32>
    %21 = arith.addf %13, %20 : vector<2x8x16xf32>
    %22 = vector.extract_strided_slice %9 {offsets = [1, 0, 0], sizes = [1, 8, 1], strides = [1, 1, 1]} : vector<20x8x1xf32> to vector<1x8x1xf32>
    %23 = vector.shape_cast %22 : vector<1x8x1xf32> to vector<8x1xf32>
    %24 = vector.shape_cast %23 : vector<8x1xf32> to vector<1x8x1xf32>
    %25 = vector.extract_strided_slice %8 {offsets = [0, 0, 1], sizes = [2, 1, 16], strides = [1, 1, 1]} : vector<2x4x20xf32> to vector<2x1x16xf32>
    %26 = vector.broadcast %24 : vector<1x8x1xf32> to vector<2x8x16xf32>
    %27 = vector.broadcast %25 : vector<2x1x16xf32> to vector<2x8x16xf32>
    %28 = arith.mulf %26, %27 : vector<2x8x16xf32>
    %29 = arith.addf %21, %28 : vector<2x8x16xf32>
    %30 = vector.extract_strided_slice %9 {offsets = [2, 0, 0], sizes = [1, 8, 1], strides = [1, 1, 1]} : vector<20x8x1xf32> to vector<1x8x1xf32>
    %31 = vector.shape_cast %30 : vector<1x8x1xf32> to vector<8x1xf32>
    %32 = vector.shape_cast %31 : vector<8x1xf32> to vector<1x8x1xf32>
    %33 = vector.extract_strided_slice %8 {offsets = [0, 0, 2], sizes = [2, 1, 16], strides = [1, 1, 1]} : vector<2x4x20xf32> to vector<2x1x16xf32>
    %34 = vector.broadcast %32 : vector<1x8x1xf32> to vector<2x8x16xf32>
    %35 = vector.broadcast %33 : vector<2x1x16xf32> to vector<2x8x16xf32>
    %36 = arith.mulf %34, %35 : vector<2x8x16xf32>
    %37 = arith.addf %29, %36 : vector<2x8x16xf32>
    %38 = vector.extract_strided_slice %9 {offsets = [3, 0, 0], sizes = [1, 8, 1], strides = [1, 1, 1]} : vector<20x8x1xf32> to vector<1x8x1xf32>
    %39 = vector.shape_cast %38 : vector<1x8x1xf32> to vector<8x1xf32>
    %40 = vector.shape_cast %39 : vector<8x1xf32> to vector<1x8x1xf32>
    %41 = vector.extract_strided_slice %8 {offsets = [0, 0, 3], sizes = [2, 1, 16], strides = [1, 1, 1]} : vector<2x4x20xf32> to vector<2x1x16xf32>
    %42 = vector.broadcast %40 : vector<1x8x1xf32> to vector<2x8x16xf32>
    %43 = vector.broadcast %41 : vector<2x1x16xf32> to vector<2x8x16xf32>
    %44 = arith.mulf %42, %43 : vector<2x8x16xf32>
    %45 = arith.addf %37, %44 : vector<2x8x16xf32>
    %46 = vector.extract_strided_slice %9 {offsets = [4, 0, 0], sizes = [1, 8, 1], strides = [1, 1, 1]} : vector<20x8x1xf32> to vector<1x8x1xf32>
    %47 = vector.shape_cast %46 : vector<1x8x1xf32> to vector<8x1xf32>
    %48 = vector.shape_cast %47 : vector<8x1xf32> to vector<1x8x1xf32>
    %49 = vector.extract_strided_slice %8 {offsets = [0, 0, 4], sizes = [2, 1, 16], strides = [1, 1, 1]} : vector<2x4x20xf32> to vector<2x1x16xf32>
    %50 = vector.broadcast %48 : vector<1x8x1xf32> to vector<2x8x16xf32>
    %51 = vector.broadcast %49 : vector<2x1x16xf32> to vector<2x8x16xf32>
    %52 = arith.mulf %50, %51 : vector<2x8x16xf32>
    %53 = arith.addf %45, %52 : vector<2x8x16xf32>
    %54 = vector.extract_strided_slice %9 {offsets = [5, 0, 0], sizes = [1, 8, 1], strides = [1, 1, 1]} : vector<20x8x1xf32> to vector<1x8x1xf32>
    %55 = vector.shape_cast %54 : vector<1x8x1xf32> to vector<8x1xf32>
    %56 = vector.shape_cast %55 : vector<8x1xf32> to vector<1x8x1xf32>
    %57 = vector.extract_strided_slice %8 {offsets = [0, 1, 0], sizes = [2, 1, 16], strides = [1, 1, 1]} : vector<2x4x20xf32> to vector<2x1x16xf32>
    %58 = vector.broadcast %56 : vector<1x8x1xf32> to vector<2x8x16xf32>
    %59 = vector.broadcast %57 : vector<2x1x16xf32> to vector<2x8x16xf32>
    %60 = arith.mulf %58, %59 : vector<2x8x16xf32>
    %61 = arith.addf %53, %60 : vector<2x8x16xf32>
    %62 = vector.extract_strided_slice %9 {offsets = [6, 0, 0], sizes = [1, 8, 1], strides = [1, 1, 1]} : vector<20x8x1xf32> to vector<1x8x1xf32>
    %63 = vector.shape_cast %62 : vector<1x8x1xf32> to vector<8x1xf32>
    %64 = vector.shape_cast %63 : vector<8x1xf32> to vector<1x8x1xf32>
    %65 = vector.extract_strided_slice %8 {offsets = [0, 1, 1], sizes = [2, 1, 16], strides = [1, 1, 1]} : vector<2x4x20xf32> to vector<2x1x16xf32>
    %66 = vector.broadcast %64 : vector<1x8x1xf32> to vector<2x8x16xf32>
    %67 = vector.broadcast %65 : vector<2x1x16xf32> to vector<2x8x16xf32>
    %68 = arith.mulf %66, %67 : vector<2x8x16xf32>
    %69 = arith.addf %61, %68 : vector<2x8x16xf32>
    %70 = vector.extract_strided_slice %9 {offsets = [7, 0, 0], sizes = [1, 8, 1], strides = [1, 1, 1]} : vector<20x8x1xf32> to vector<1x8x1xf32>
    %71 = vector.shape_cast %70 : vector<1x8x1xf32> to vector<8x1xf32>
    %72 = vector.shape_cast %71 : vector<8x1xf32> to vector<1x8x1xf32>
    %73 = vector.extract_strided_slice %8 {offsets = [0, 1, 2], sizes = [2, 1, 16], strides = [1, 1, 1]} : vector<2x4x20xf32> to vector<2x1x16xf32>
    %74 = vector.broadcast %72 : vector<1x8x1xf32> to vector<2x8x16xf32>
    %75 = vector.broadcast %73 : vector<2x1x16xf32> to vector<2x8x16xf32>
    %76 = arith.mulf %74, %75 : vector<2x8x16xf32>
    %77 = arith.addf %69, %76 : vector<2x8x16xf32>
    %78 = vector.extract_strided_slice %9 {offsets = [8, 0, 0], sizes = [1, 8, 1], strides = [1, 1, 1]} : vector<20x8x1xf32> to vector<1x8x1xf32>
    %79 = vector.shape_cast %78 : vector<1x8x1xf32> to vector<8x1xf32>
    %80 = vector.shape_cast %79 : vector<8x1xf32> to vector<1x8x1xf32>
    %81 = vector.extract_strided_slice %8 {offsets = [0, 1, 3], sizes = [2, 1, 16], strides = [1, 1, 1]} : vector<2x4x20xf32> to vector<2x1x16xf32>
    %82 = vector.broadcast %80 : vector<1x8x1xf32> to vector<2x8x16xf32>
    %83 = vector.broadcast %81 : vector<2x1x16xf32> to vector<2x8x16xf32>
    %84 = arith.mulf %82, %83 : vector<2x8x16xf32>
    %85 = arith.addf %77, %84 : vector<2x8x16xf32>
    %86 = vector.extract_strided_slice %9 {offsets = [9, 0, 0], sizes = [1, 8, 1], strides = [1, 1, 1]} : vector<20x8x1xf32> to vector<1x8x1xf32>
    %87 = vector.shape_cast %86 : vector<1x8x1xf32> to vector<8x1xf32>
    %88 = vector.shape_cast %87 : vector<8x1xf32> to vector<1x8x1xf32>
    %89 = vector.extract_strided_slice %8 {offsets = [0, 1, 4], sizes = [2, 1, 16], strides = [1, 1, 1]} : vector<2x4x20xf32> to vector<2x1x16xf32>
    %90 = vector.broadcast %88 : vector<1x8x1xf32> to vector<2x8x16xf32>
    %91 = vector.broadcast %89 : vector<2x1x16xf32> to vector<2x8x16xf32>
    %92 = arith.mulf %90, %91 : vector<2x8x16xf32>
    %93 = arith.addf %85, %92 : vector<2x8x16xf32>
    %94 = vector.extract_strided_slice %9 {offsets = [10, 0, 0], sizes = [1, 8, 1], strides = [1, 1, 1]} : vector<20x8x1xf32> to vector<1x8x1xf32>
    %95 = vector.shape_cast %94 : vector<1x8x1xf32> to vector<8x1xf32>
    %96 = vector.shape_cast %95 : vector<8x1xf32> to vector<1x8x1xf32>
    %97 = vector.extract_strided_slice %8 {offsets = [0, 2, 0], sizes = [2, 1, 16], strides = [1, 1, 1]} : vector<2x4x20xf32> to vector<2x1x16xf32>
    %98 = vector.broadcast %96 : vector<1x8x1xf32> to vector<2x8x16xf32>
    %99 = vector.broadcast %97 : vector<2x1x16xf32> to vector<2x8x16xf32>
    %100 = arith.mulf %98, %99 : vector<2x8x16xf32>
    %101 = arith.addf %93, %100 : vector<2x8x16xf32>
    %102 = vector.extract_strided_slice %9 {offsets = [11, 0, 0], sizes = [1, 8, 1], strides = [1, 1, 1]} : vector<20x8x1xf32> to vector<1x8x1xf32>
    %103 = vector.shape_cast %102 : vector<1x8x1xf32> to vector<8x1xf32>
    %104 = vector.shape_cast %103 : vector<8x1xf32> to vector<1x8x1xf32>
    %105 = vector.extract_strided_slice %8 {offsets = [0, 2, 1], sizes = [2, 1, 16], strides = [1, 1, 1]} : vector<2x4x20xf32> to vector<2x1x16xf32>
    %106 = vector.broadcast %104 : vector<1x8x1xf32> to vector<2x8x16xf32>
    %107 = vector.broadcast %105 : vector<2x1x16xf32> to vector<2x8x16xf32>
    %108 = arith.mulf %106, %107 : vector<2x8x16xf32>
    %109 = arith.addf %101, %108 : vector<2x8x16xf32>
    %110 = vector.extract_strided_slice %9 {offsets = [12, 0, 0], sizes = [1, 8, 1], strides = [1, 1, 1]} : vector<20x8x1xf32> to vector<1x8x1xf32>
    %111 = vector.shape_cast %110 : vector<1x8x1xf32> to vector<8x1xf32>
    %112 = vector.shape_cast %111 : vector<8x1xf32> to vector<1x8x1xf32>
    %113 = vector.extract_strided_slice %8 {offsets = [0, 2, 2], sizes = [2, 1, 16], strides = [1, 1, 1]} : vector<2x4x20xf32> to vector<2x1x16xf32>
    %114 = vector.broadcast %112 : vector<1x8x1xf32> to vector<2x8x16xf32>
    %115 = vector.broadcast %113 : vector<2x1x16xf32> to vector<2x8x16xf32>
    %116 = arith.mulf %114, %115 : vector<2x8x16xf32>
    %117 = arith.addf %109, %116 : vector<2x8x16xf32>
    %118 = vector.extract_strided_slice %9 {offsets = [13, 0, 0], sizes = [1, 8, 1], strides = [1, 1, 1]} : vector<20x8x1xf32> to vector<1x8x1xf32>
    %119 = vector.shape_cast %118 : vector<1x8x1xf32> to vector<8x1xf32>
    %120 = vector.shape_cast %119 : vector<8x1xf32> to vector<1x8x1xf32>
    %121 = vector.extract_strided_slice %8 {offsets = [0, 2, 3], sizes = [2, 1, 16], strides = [1, 1, 1]} : vector<2x4x20xf32> to vector<2x1x16xf32>
    %122 = vector.broadcast %120 : vector<1x8x1xf32> to vector<2x8x16xf32>
    %123 = vector.broadcast %121 : vector<2x1x16xf32> to vector<2x8x16xf32>
    %124 = arith.mulf %122, %123 : vector<2x8x16xf32>
    %125 = arith.addf %117, %124 : vector<2x8x16xf32>
    %126 = vector.extract_strided_slice %9 {offsets = [14, 0, 0], sizes = [1, 8, 1], strides = [1, 1, 1]} : vector<20x8x1xf32> to vector<1x8x1xf32>
    %127 = vector.shape_cast %126 : vector<1x8x1xf32> to vector<8x1xf32>
    %128 = vector.shape_cast %127 : vector<8x1xf32> to vector<1x8x1xf32>
    %129 = vector.extract_strided_slice %8 {offsets = [0, 2, 4], sizes = [2, 1, 16], strides = [1, 1, 1]} : vector<2x4x20xf32> to vector<2x1x16xf32>
    %130 = vector.broadcast %128 : vector<1x8x1xf32> to vector<2x8x16xf32>
    %131 = vector.broadcast %129 : vector<2x1x16xf32> to vector<2x8x16xf32>
    %132 = arith.mulf %130, %131 : vector<2x8x16xf32>
    %133 = arith.addf %125, %132 : vector<2x8x16xf32>
    %134 = vector.extract_strided_slice %9 {offsets = [15, 0, 0], sizes = [1, 8, 1], strides = [1, 1, 1]} : vector<20x8x1xf32> to vector<1x8x1xf32>
    %135 = vector.shape_cast %134 : vector<1x8x1xf32> to vector<8x1xf32>
    %136 = vector.shape_cast %135 : vector<8x1xf32> to vector<1x8x1xf32>
    %137 = vector.extract_strided_slice %8 {offsets = [0, 3, 0], sizes = [2, 1, 16], strides = [1, 1, 1]} : vector<2x4x20xf32> to vector<2x1x16xf32>
    %138 = vector.broadcast %136 : vector<1x8x1xf32> to vector<2x8x16xf32>
    %139 = vector.broadcast %137 : vector<2x1x16xf32> to vector<2x8x16xf32>
    %140 = arith.mulf %138, %139 : vector<2x8x16xf32>
    %141 = arith.addf %133, %140 : vector<2x8x16xf32>
    %142 = vector.extract_strided_slice %9 {offsets = [16, 0, 0], sizes = [1, 8, 1], strides = [1, 1, 1]} : vector<20x8x1xf32> to vector<1x8x1xf32>
    %143 = vector.shape_cast %142 : vector<1x8x1xf32> to vector<8x1xf32>
    %144 = vector.shape_cast %143 : vector<8x1xf32> to vector<1x8x1xf32>
    %145 = vector.extract_strided_slice %8 {offsets = [0, 3, 1], sizes = [2, 1, 16], strides = [1, 1, 1]} : vector<2x4x20xf32> to vector<2x1x16xf32>
    %146 = vector.broadcast %144 : vector<1x8x1xf32> to vector<2x8x16xf32>
    %147 = vector.broadcast %145 : vector<2x1x16xf32> to vector<2x8x16xf32>
    %148 = arith.mulf %146, %147 : vector<2x8x16xf32>
    %149 = arith.addf %141, %148 : vector<2x8x16xf32>
    %150 = vector.extract_strided_slice %9 {offsets = [17, 0, 0], sizes = [1, 8, 1], strides = [1, 1, 1]} : vector<20x8x1xf32> to vector<1x8x1xf32>
    %151 = vector.shape_cast %150 : vector<1x8x1xf32> to vector<8x1xf32>
    %152 = vector.shape_cast %151 : vector<8x1xf32> to vector<1x8x1xf32>
    %153 = vector.extract_strided_slice %8 {offsets = [0, 3, 2], sizes = [2, 1, 16], strides = [1, 1, 1]} : vector<2x4x20xf32> to vector<2x1x16xf32>
    %154 = vector.broadcast %152 : vector<1x8x1xf32> to vector<2x8x16xf32>
    %155 = vector.broadcast %153 : vector<2x1x16xf32> to vector<2x8x16xf32>
    %156 = arith.mulf %154, %155 : vector<2x8x16xf32>
    %157 = arith.addf %149, %156 : vector<2x8x16xf32>
    %158 = vector.extract_strided_slice %9 {offsets = [18, 0, 0], sizes = [1, 8, 1], strides = [1, 1, 1]} : vector<20x8x1xf32> to vector<1x8x1xf32>
    %159 = vector.shape_cast %158 : vector<1x8x1xf32> to vector<8x1xf32>
    %160 = vector.shape_cast %159 : vector<8x1xf32> to vector<1x8x1xf32>
    %161 = vector.extract_strided_slice %8 {offsets = [0, 3, 3], sizes = [2, 1, 16], strides = [1, 1, 1]} : vector<2x4x20xf32> to vector<2x1x16xf32>
    %162 = vector.broadcast %160 : vector<1x8x1xf32> to vector<2x8x16xf32>
    %163 = vector.broadcast %161 : vector<2x1x16xf32> to vector<2x8x16xf32>
    %164 = arith.mulf %162, %163 : vector<2x8x16xf32>
    %165 = arith.addf %157, %164 : vector<2x8x16xf32>
    %166 = vector.extract_strided_slice %9 {offsets = [19, 0, 0], sizes = [1, 8, 1], strides = [1, 1, 1]} : vector<20x8x1xf32> to vector<1x8x1xf32>
    %167 = vector.shape_cast %166 : vector<1x8x1xf32> to vector<8x1xf32>
    %168 = vector.shape_cast %167 : vector<8x1xf32> to vector<1x8x1xf32>
    %169 = vector.extract_strided_slice %8 {offsets = [0, 3, 4], sizes = [2, 1, 16], strides = [1, 1, 1]} : vector<2x4x20xf32> to vector<2x1x16xf32>
    %170 = vector.broadcast %168 : vector<1x8x1xf32> to vector<2x8x16xf32>
    %171 = vector.broadcast %169 : vector<2x1x16xf32> to vector<2x8x16xf32>
    %172 = arith.mulf %170, %171 : vector<2x8x16xf32>
    %173 = arith.addf %165, %172 : vector<2x8x16xf32>
    %cst = arith.constant 0.000000e+00 : f32
    %174 = vector.broadcast %cst : f32 to vector<2x8x16xf32>
    %175 = arith.maximumf %173, %174 : vector<2x8x16xf32>
    %c0_19 = arith.constant 0 : index
    %c0_20 = arith.constant 0 : index
    %c0_21 = arith.constant 0 : index
    %176 = vector.load %arg5[%c0_19, %c0_20, %c0_21] : memref<2x8x16xf32, #tpu.memory_space<vmem>>, vector<2x8x16xf32>
    tpu.vector_store %arg5[%c0_19, %c0_20, %c0_21], %175 {strides = array<i32>} : memref<2x8x16xf32, #tpu.memory_space<vmem>>, vector<2x8x16xf32>,
    %cst_22 = arith.constant dense<0.000000e+00> : vector<2x8xf32>
    %177 = vector.multi_reduction <add>, %175, %cst_22 [2] : vector<2x8x16xf32> to vector<2x8xf32>
    %178 = vector.shape_cast %177 : vector<2x8xf32> to vector<2x8x1xf32>
    %cst_23 = arith.constant dense<0.000000e+00> : vector<8x1xf32>
    %179 = vector.multi_reduction <add>, %178, %cst_23 [0] : vector<2x8x1xf32> to vector<8x1xf32>
    %180 = vector.shape_cast %179 : vector<8x1xf32> to vector<1x8x1xf32>
    %181 = arith.mulf %175, %175 : vector<2x8x16xf32>
    %cst_24 = arith.constant dense<0.000000e+00> : vector<2x8xf32>
    %182 = vector.multi_reduction <add>, %181, %cst_24 [2] : vector<2x8x16xf32> to vector<2x8xf32>
    %183 = vector.shape_cast %182 : vector<2x8xf32> to vector<2x8x1xf32>
    %cst_25 = arith.constant dense<0.000000e+00> : vector<8x1xf32>
    %184 = vector.multi_reduction <add>, %183, %cst_25 [0] : vector<2x8x1xf32> to vector<8x1xf32>
    %185 = vector.shape_cast %184 : vector<8x1xf32> to vector<1x8x1xf32>
    %c0_26 = arith.constant 0 : index
    %c0_27 = arith.constant 0 : index
    %c0_28 = arith.constant 0 : index
    %186 = vector.load %arg6[%c0_26, %c0_27, %c0_28] : memref<1x8x2xf32, #tpu.memory_space<vmem>>, vector<1x8x1xf32>
    tpu.vector_store %arg6[%c0_26, %c0_27, %c0_28], %180 {strides = array<i32>} : memref<1x8x2xf32, #tpu.memory_space<vmem>>, vector<1x8x1xf32>,
    %c0_29 = arith.constant 0 : index
    %c0_30 = arith.constant 0 : index
    %c1 = arith.constant 1 : index
    %187 = vector.load %arg6[%c0_29, %c0_30, %c1] : memref<1x8x2xf32, #tpu.memory_space<vmem>>, vector<1x8x1xf32>
    tpu.vector_store %arg6[%c0_29, %c0_30, %c1], %185 {strides = array<i32>} : memref<1x8x2xf32, #tpu.memory_space<vmem>>, vector<1x8x1xf32>,
    return
  }
  func.func @transform_0(%arg0: i32) -> (i32, i32, i32) {
    %c0_i32 = arith.constant 0 : i32
    %c0_i32_0 = arith.constant 0 : i32
    %c0_i32_1 = arith.constant 0 : i32
    return %arg0, %c0_i32, %c0_i32_0 : i32, i32, i32
  }
  func.func @transform_1(%arg0: i32) -> (i32, i32, i32) {
    %c0_i32 = arith.constant 0 : i32
    %c0_i32_0 = arith.constant 0 : i32
    %c0_i32_1 = arith.constant 0 : i32
    %c0_i32_2 = arith.constant 0 : i32
    return %c0_i32, %c0_i32_0, %c0_i32_1 : i32, i32, i32
  }
  func.func @transform_2(%arg0: i32) -> (i32, i32) {
    %c0_i32 = arith.constant 0 : i32
    %c0_i32_0 = arith.constant 0 : i32
    %c0_i32_1 = arith.constant 0 : i32
    return %c0_i32, %c0_i32_0 : i32, i32
  }
  func.func @transform_3(%arg0: i32) -> (i32, i32) {
    %c0_i32 = arith.constant 0 : i32
    %c0_i32_0 = arith.constant 0 : i32
    %c0_i32_1 = arith.constant 0 : i32
    return %c0_i32, %c0_i32_0 : i32, i32
  }
  func.func @transform_4(%arg0: i32) -> (i32, i32, i32) {
    %c0_i32 = arith.constant 0 : i32
    %c0_i32_0 = arith.constant 0 : i32
    %c0_i32_1 = arith.constant 0 : i32
    return %arg0, %c0_i32, %c0_i32_0 : i32, i32, i32
  }
  func.func @transform_5(%arg0: i32) -> (i32, i32, i32) {
    %c0_i32 = arith.constant 0 : i32
    %c0_i32_0 = arith.constant 0 : i32
    %c0_i32_1 = arith.constant 0 : i32
    return %arg0, %c0_i32, %c0_i32_0 : i32, i32, i32
  }
}

</mosaic_0001>

<llo_original>
// kernel: tpu_custom_call.1
$region0: #{tpu_custom_call.1}
  #allocation0 [shape = 'u32[]', space=smem, size = 0x4, offset = 0x4, fixed_abs, tag = 'smem constant byte address 0x4 - core index']
  #allocation1 [shape = 'u32[144,128]{1,0:T(1,128)}', space=vmem, size = 0x12000, scoped, tag = 'internal scratch']
  #allocation2 [shape = 'f32[2,4,20]{2,1,0:T(4,128)}', space=vmem, size = 0x1000, scoped, tag = 'scratch operand']
  %s0 = inlined_call_operand.vmem [shape: f32[2,4,16], index: 0, kind: input, shape index: {}]
  %s1 = inlined_call_operand.vmem [shape: f32[20,8,1], index: 1, kind: input, shape index: {}]
  %s2 = inlined_call_operand.vmem [shape: f32[8,1], index: 2, kind: input, shape index: {}]
  %s3 = inlined_call_operand.vmem [shape: f32[4,1], index: 3, kind: input, shape index: {}]
  %s4 = inlined_call_operand.hbm [shape: f32[2,8,16], index: 4, kind: output, shape index: {0}]
  %s5 = inlined_call_operand.vmem [shape: f32[1,8,2], index: 5, kind: output, shape index: {1}]
  %6 = xla_tuple %s4, %s5
  %s7 = sld [smem:[#allocation0]]
  $region34: #{tpu_custom_call.1} parent=0
    _
  %s9 = ssub.s32 1, %s7
  %s10 = scalar_select 0, %s9, %s7
  $region1: #{tpu_custom_call.1} parent=0
    #allocation3 [shape = 'u8[8192]{0}', space=vmem, size = 0x2000, scoped, tag = 'output window, operand 0, single buffered']
    #allocation4 [shape = 's32[1]{0}', space=sflag, size = 0x4, scoped, tag = 'scoped memory for tpu_custom_call.1']
    %11 = vsyncpa [#allocation4], 0
    // Predicated region
    $region2: #{tpu_custom_call.1} parent=1 // pred_check
      _
    $region3: #{tpu_custom_call.1} parent=1 // pred_check_branch
      %13 = sbr.rel (0) target = $region5
    $region4: #{tpu_custom_call.1} parent=1 // pred_region
      _
    $region5: #{tpu_custom_call.1} parent=1 // pred_fallthru
      _
    // Predicated region
    $region6: #{tpu_custom_call.1} parent=1 // pred_check
      _
    $region7: #{tpu_custom_call.1} parent=1 // pred_check_branch
      %15 = sbr.rel (0) target = $region9
    $region8: #{tpu_custom_call.1} parent=1 // pred_region
      _
    $region9: #{tpu_custom_call.1} parent=1 // pred_fallthru
      _
    // Predicated region
    $region10: #{tpu_custom_call.1} parent=1 // pred_check
      _
    $region11: #{tpu_custom_call.1} parent=1 // pred_check_branch
      %17 = sbr.rel (0) target = $region13
    $region12: #{tpu_custom_call.1} parent=1 // pred_region
      _
    $region13: #{tpu_custom_call.1} parent=1 // pred_fallthru
      _
    // Predicated region
    $region14: #{tpu_custom_call.1} parent=1 // pred_check
      _
    $region15: #{tpu_custom_call.1} parent=1 // pred_check_branch
      %19 = sbr.rel (0) target = $region17
    $region16: #{tpu_custom_call.1} parent=1 // pred_region
      _
    $region17: #{tpu_custom_call.1} parent=1 // pred_fallthru
      _
    %v20 = vld [vmem:[%s3] sm:$0xf]
    %22 = vset.pattern.permute.xlu0 0
    %23 = vperm.xlu0 %22, %v20
    %v24 = vpop.permute.xlu0 %23
    %vm26 = vcmask 11264
    %27 = vst.msk [vmem:[#allocation2] sm:$0xf] %vm26, %v24
    %28 = vst.msk [vmem:[#allocation2 + $0x4] sm:$0xf] %vm26, %v24
    %vm29 = vcmask 158864
    %30 = vst.msk [vmem:[#allocation2] sm:$0xf] %vm29, %v24
    %31 = vst.msk [vmem:[#allocation2 + $0x4] sm:$0xf] %vm29, %v24
    %v32 = vld [vmem:[%s0] sm:$0xf]
    %v33 = vld [vmem:[%s0 + $0x4] sm:$0xf]
    %36 = vrot.lane.b32.xlu0 %v32, 2
    %v37 = vpop.permute.xlu0 %36
    %38 = vrot.lane.b32.xlu0 %v33, 2
    %v39 = vpop.permute.xlu0 %38
    %vm42 = vcmask 142352
    %43 = vst.msk [vmem:[#allocation2] sm:$0xf] %vm42, %v37
    %44 = vst.msk [vmem:[#allocation2 + $0x4] sm:$0xf] %vm42, %v39
    %v45 = vld [vmem:[#allocation2] sm:$0xf]
    %v46 = vld [vmem:[#allocation2 + $0x4] sm:$0xf]
    %v47 = vld [vmem:[%s1] sm:$0xff]
    %v48 = vld [vmem:[%s1 + $0x8] sm:$0xff]
    %v49 = vld [vmem:[%s1 + $0x10] sm:$0xff]
    %v50 = vld [vmem:[%s1 + $0x18] sm:$0xff]
    %v51 = vld [vmem:[%s1 + $0x20] sm:$0xff]
    %v52 = vld [vmem:[%s1 + $0x28] sm:$0xff]
    %v53 = vld [vmem:[%s1 + $0x30] sm:$0xff]
    %v54 = vld [vmem:[%s1 + $0x38] sm:$0xff]
    %v55 = vld [vmem:[%s1 + $0x40] sm:$0xff]
    %v56 = vld [vmem:[%s1 + $0x48] sm:$0xff]
    %v57 = vld [vmem:[%s1 + $0x50] sm:$0xff]
    %v58 = vld [vmem:[%s1 + $0x58] sm:$0xff]
    %v59 = vld [vmem:[%s1 + $0x60] sm:$0xff]
    %v60 = vld [vmem:[%s1 + $0x68] sm:$0xff]
    %v61 = vld [vmem:[%s1 + $0x70] sm:$0xff]
    %v62 = vld [vmem:[%s1 + $0x78] sm:$0xff]
    %v63 = vld [vmem:[%s1 + $0x80] sm:$0xff]
    %v64 = vld [vmem:[%s1 + $0x88] sm:$0xff]
    %v65 = vld [vmem:[%s1 + $0x90] sm:$0xff]
    %v66 = vld [vmem:[%s1 + $0x98] sm:$0xff]
    %v67 = vld [vmem:[%s2] sm:$0xff]
    %69 = vset.pattern.permute.xlu0 0
    %70 = vperm.xlu0 %69, %v67
    %v71 = vpop.permute.xlu0 %70
    %74 = vset.pattern.permute.xlu0 0
    %75 = vperm.xlu0 %74, %v47
    %v76 = vpop.permute.xlu0 %75
    %v78 = vlaneseq
    %v79 = vshrl.u32 %v78, 7
    %v80 = vsub.s32 0, %v79
    %v81 = vrot.slane %v45, %v80
    %v82 = vlaneseq
    %v83 = vshrl.u32 %v82, 7
    %v84 = vsub.s32 0, %v83
    %v85 = vrot.slane %v46, %v84
    %v86 = vmul.f32 %v76, %v81
    %v87 = vmul.f32 %v76, %v85
    %v88 = vadd.f32 %v71, %v86
    %v89 = vadd.f32 %v71, %v87
    %91 = vset.pattern.permute.xlu0 0
    %92 = vperm.xlu0 %91, %v48
    %v93 = vpop.permute.xlu0 %92
    %v95 = vmul.f32 %v93, %v81
    %v96 = vmul.f32 %v93, %v85
    %99 = vrot.lane.b32.xlu0 %v95, 127
    %v100 = vpop.permute.xlu0 %99
    %101 = vrot.lane.b32.xlu0 %v96, 127
    %v102 = vpop.permute.xlu0 %101
    %v105 = vadd.f32 %v88, %v100
    %v106 = vadd.f32 %v89, %v102
    %108 = vset.pattern.permute.xlu0 0
    %109 = vperm.xlu0 %108, %v49
    %v110 = vpop.permute.xlu0 %109
    %v112 = vmul.f32 %v110, %v81
    %v113 = vmul.f32 %v110, %v85
    %116 = vrot.lane.b32.xlu0 %v112, 126
    %v117 = vpop.permute.xlu0 %116
    %118 = vrot.lane.b32.xlu0 %v113, 126
    %v119 = vpop.permute.xlu0 %118
    %v122 = vadd.f32 %v105, %v117
    %v123 = vadd.f32 %v106, %v119
    %125 = vset.pattern.permute.xlu0 0
    %126 = vperm.xlu0 %125, %v50
    %v127 = vpop.permute.xlu0 %126
    %v129 = vmul.f32 %v127, %v81
    %v130 = vmul.f32 %v127, %v85
    %133 = vrot.lane.b32.xlu0 %v129, 125
    %v134 = vpop.permute.xlu0 %133
    %135 = vrot.lane.b32.xlu0 %v130, 125
    %v136 = vpop.permute.xlu0 %135
    %v139 = vadd.f32 %v122, %v134
    %v140 = vadd.f32 %v123, %v136
    %142 = vset.pattern.permute.xlu0 0
    %143 = vperm.xlu0 %142, %v51
    %v144 = vpop.permute.xlu0 %143
    %v146 = vmul.f32 %v144, %v81
    %v147 = vmul.f32 %v144, %v85
    %150 = vrot.lane.b32.xlu0 %v146, 124
    %v151 = vpop.permute.xlu0 %150
    %152 = vrot.lane.b32.xlu0 %v147, 124
    %v153 = vpop.permute.xlu0 %152
    %v156 = vadd.f32 %v139, %v151
    %v157 = vadd.f32 %v140, %v153
    %159 = vset.pattern.permute.xlu0 0
    %160 = vperm.xlu0 %159, %v52
    %v161 = vpop.permute.xlu0 %160
    %v163 = vlaneseq
    %v164 = vshrl.u32 %v163, 7
    %v165 = vsub.s32 1, %v164
    %v166 = vrot.slane %v45, %v165
    %v167 = vlaneseq
    %v168 = vshrl.u32 %v167, 7
    %v169 = vsub.s32 1, %v168
    %v170 = vrot.slane %v46, %v169
    %v171 = vmul.f32 %v161, %v166
    %v172 = vmul.f32 %v161, %v170
    %v173 = vadd.f32 %v156, %v171
    %v174 = vadd.f32 %v157, %v172
    %176 = vset.pattern.permute.xlu0 0
    %177 = vperm.xlu0 %176, %v53
    %v178 = vpop.permute.xlu0 %177
    %v180 = vmul.f32 %v178, %v166
    %v181 = vmul.f32 %v178, %v170
    %184 = vrot.lane.b32.xlu0 %v180, 127
    %v185 = vpop.permute.xlu0 %184
    %186 = vrot.lane.b32.xlu0 %v181, 127
    %v187 = vpop.permute.xlu0 %186
    %v190 = vadd.f32 %v173, %v185
    %v191 = vadd.f32 %v174, %v187
    %193 = vset.pattern.permute.xlu0 0
    %194 = vperm.xlu0 %193, %v54
    %v195 = vpop.permute.xlu0 %194
    %v197 = vmul.f32 %v195, %v166
    %v198 = vmul.f32 %v195, %v170
    %201 = vrot.lane.b32.xlu0 %v197, 126
    %v202 = vpop.permute.xlu0 %201
    %203 = vrot.lane.b32.xlu0 %v198, 126
    %v204 = vpop.permute.xlu0 %203
    %v207 = vadd.f32 %v190, %v202
    %v208 = vadd.f32 %v191, %v204
    %210 = vset.pattern.permute.xlu0 0
    %211 = vperm.xlu0 %210, %v55
    %v212 = vpop.permute.xlu0 %211
    %v214 = vmul.f32 %v212, %v166
    %v215 = vmul.f32 %v212, %v170
    %218 = vrot.lane.b32.xlu0 %v214, 125
    %v219 = vpop.permute.xlu0 %218
    %220 = vrot.lane.b32.xlu0 %v215, 125
    %v221 = vpop.permute.xlu0 %220
    %v224 = vadd.f32 %v207, %v219
    %v225 = vadd.f32 %v208, %v221
    %227 = vset.pattern.permute.xlu0 0
    %228 = vperm.xlu0 %227, %v56
    %v229 = vpop.permute.xlu0 %228
    %v231 = vmul.f32 %v229, %v166
    %v232 = vmul.f32 %v229, %v170
    %235 = vrot.lane.b32.xlu0 %v231, 124
    %v236 = vpop.permute.xlu0 %235
    %237 = vrot.lane.b32.xlu0 %v232, 124
    %v238 = vpop.permute.xlu0 %237
    %v241 = vadd.f32 %v224, %v236
    %v242 = vadd.f32 %v225, %v238
    %244 = vset.pattern.permute.xlu0 0
    %245 = vperm.xlu0 %244, %v57
    %v246 = vpop.permute.xlu0 %245
    %v248 = vlaneseq
    %v249 = vshrl.u32 %v248, 7
    %v250 = vsub.s32 2, %v249
    %v251 = vrot.slane %v45, %v250
    %v252 = vlaneseq
    %v253 = vshrl.u32 %v252, 7
    %v254 = vsub.s32 2, %v253
    %v255 = vrot.slane %v46, %v254
    %v256 = vmul.f32 %v246, %v251
    %v257 = vmul.f32 %v246, %v255
    %v258 = vadd.f32 %v241, %v256
    %v259 = vadd.f32 %v242, %v257
    %261 = vset.pattern.permute.xlu0 0
    %262 = vperm.xlu0 %261, %v58
    %v263 = vpop.permute.xlu0 %262
    %v265 = vmul.f32 %v263, %v251
    %v266 = vmul.f32 %v263, %v255
    %269 = vrot.lane.b32.xlu0 %v265, 127
    %v270 = vpop.permute.xlu0 %269
    %271 = vrot.lane.b32.xlu0 %v266, 127
    %v272 = vpop.permute.xlu0 %271
    %v275 = vadd.f32 %v258, %v270
    %v276 = vadd.f32 %v259, %v272
    %278 = vset.pattern.permute.xlu0 0
    %279 = vperm.xlu0 %278, %v59
    %v280 = vpop.permute.xlu0 %279
    %v282 = vmul.f32 %v280, %v251
    %v283 = vmul.f32 %v280, %v255
    %286 = vrot.lane.b32.xlu0 %v282, 126
    %v287 = vpop.permute.xlu0 %286
    %288 = vrot.lane.b32.xlu0 %v283, 126
    %v289 = vpop.permute.xlu0 %288
    %v292 = vadd.f32 %v275, %v287
    %v293 = vadd.f32 %v276, %v289
    %295 = vset.pattern.permute.xlu0 0
    %296 = vperm.xlu0 %295, %v60
    %v297 = vpop.permute.xlu0 %296
    %v299 = vmul.f32 %v297, %v251
    %v300 = vmul.f32 %v297, %v255
    %303 = vrot.lane.b32.xlu0 %v299, 125
    %v304 = vpop.permute.xlu0 %303
    %305 = vrot.lane.b32.xlu0 %v300, 125
    %v306 = vpop.permute.xlu0 %305
    %v309 = vadd.f32 %v292, %v304
    %v310 = vadd.f32 %v293, %v306
    %312 = vset.pattern.permute.xlu0 0
    %313 = vperm.xlu0 %312, %v61
    %v314 = vpop.permute.xlu0 %313
    %v316 = vmul.f32 %v314, %v251
    %v317 = vmul.f32 %v314, %v255
    %320 = vrot.lane.b32.xlu0 %v316, 124
    %v321 = vpop.permute.xlu0 %320
    %322 = vrot.lane.b32.xlu0 %v317, 124
    %v323 = vpop.permute.xlu0 %322
    %v326 = vadd.f32 %v309, %v321
    %v327 = vadd.f32 %v310, %v323
    %329 = vset.pattern.permute.xlu0 0
    %330 = vperm.xlu0 %329, %v62
    %v331 = vpop.permute.xlu0 %330
    %v333 = vlaneseq
    %v334 = vshrl.u32 %v333, 7
    %v335 = vsub.s32 3, %v334
    %v336 = vrot.slane %v45, %v335
    %v337 = vlaneseq
    %v338 = vshrl.u32 %v337, 7
    %v339 = vsub.s32 3, %v338
    %v340 = vrot.slane %v46, %v339
    %v341 = vmul.f32 %v331, %v336
    %v342 = vmul.f32 %v331, %v340
    %v343 = vadd.f32 %v326, %v341
    %v344 = vadd.f32 %v327, %v342
    %346 = vset.pattern.permute.xlu0 0
    %347 = vperm.xlu0 %346, %v63
    %v348 = vpop.permute.xlu0 %347
    %v350 = vmul.f32 %v348, %v336
    %v351 = vmul.f32 %v348, %v340
    %354 = vrot.lane.b32.xlu0 %v350, 127
    %v355 = vpop.permute.xlu0 %354
    %356 = vrot.lane.b32.xlu0 %v351, 127
    %v357 = vpop.permute.xlu0 %356
    %v360 = vadd.f32 %v343, %v355
    %v361 = vadd.f32 %v344, %v357
    %363 = vset.pattern.permute.xlu0 0
    %364 = vperm.xlu0 %363, %v64
    %v365 = vpop.permute.xlu0 %364
    %v367 = vmul.f32 %v365, %v336
    %v368 = vmul.f32 %v365, %v340
    %371 = vrot.lane.b32.xlu0 %v367, 126
    %v372 = vpop.permute.xlu0 %371
    %373 = vrot.lane.b32.xlu0 %v368, 126
    %v374 = vpop.permute.xlu0 %373
    %v377 = vadd.f32 %v360, %v372
    %v378 = vadd.f32 %v361, %v374
    %380 = vset.pattern.permute.xlu0 0
    %381 = vperm.xlu0 %380, %v65
    %v382 = vpop.permute.xlu0 %381
    %v384 = vmul.f32 %v382, %v336
    %v385 = vmul.f32 %v382, %v340
    %388 = vrot.lane.b32.xlu0 %v384, 125
    %v389 = vpop.permute.xlu0 %388
    %390 = vrot.lane.b32.xlu0 %v385, 125
    %v391 = vpop.permute.xlu0 %390
    %v394 = vadd.f32 %v377, %v389
    %v395 = vadd.f32 %v378, %v391
    %397 = vset.pattern.permute.xlu0 0
    %398 = vperm.xlu0 %397, %v66
    %v399 = vpop.permute.xlu0 %398
    %v401 = vmul.f32 %v399, %v336
    %v402 = vmul.f32 %v399, %v340
    %405 = vrot.lane.b32.xlu0 %v401, 124
    %v406 = vpop.permute.xlu0 %405
    %407 = vrot.lane.b32.xlu0 %v402, 124
    %v408 = vpop.permute.xlu0 %407
    %v411 = vadd.f32 %v394, %v406
    %v412 = vadd.f32 %v395, %v408
    %v413 = vmax.f32 %v411, 0.0
    %v414 = vmax.f32 %v412, 0.0
    %vm415 = vcmask 130048
    %416 = vst.msk [vmem:[#allocation3] sm:$0xff] %vm415, %v413
    %417 = vst.msk [vmem:[#allocation3 + $0x8] sm:$0xff] %vm415, %v414
    %v418 = vsel %vm415, %v413, 0.0
    %419 = vadd.xlane.f32.xlu0 %v418
    %v420 = vpop.xlane.xlu0 %419
    %v421 = vsel %vm415, %v414, 0.0
    %422 = vadd.xlane.f32.xlu0 %v421
    %v423 = vpop.xlane.xlu0 %422
    %v424 = vadd.f32 %v420, %v423
    %v425 = vmul.f32 %v413, %v413
    %v426 = vmul.f32 %v414, %v414
    %v427 = vsel %vm415, %v425, 0.0
    %428 = vadd.xlane.f32.xlu0 %v427
    %v429 = vpop.xlane.xlu0 %428
    %v430 = vsel %vm415, %v426, 0.0
    %431 = vadd.xlane.f32.xlu0 %v430
    %v432 = vpop.xlane.xlu0 %431
    %v433 = vadd.f32 %v429, %v432
    %vm434 = vcmask 7168
    %435 = vst.msk [vmem:[%s5] sm:$0xff] %vm434, %v424
    %vm436 = vcmask 15368
    %437 = vst.msk [vmem:[%s5] sm:$0xff] %vm436, %v433
    // Predicated region
    $region18: #{tpu_custom_call.1} parent=1 // pred_check
      _
    $region19: #{tpu_custom_call.1} parent=1 // pred_check_branch
      %439 = sbr.rel (0) target = $region21
    $region20: #{tpu_custom_call.1} parent=1 // pred_region
      %s441 = ssub.s32 256, 256
      %442 = vsyncadd [#allocation4], %s441
      %s443 = sshll.u32 [#allocation3], 4
      %s444 = int_to_ptr.vmem [resolvable:$true] %s443
      %449 = dma.vmem_to_hbm [thread:$0]  %s444, 256, %s4, [#allocation4], 128, 128, 8
    $region21: #{tpu_custom_call.1} parent=1 // pred_fallthru
      _
    // Predicated region
    $region22: #{tpu_custom_call.1} parent=1 // pred_check
      _
    $region23: #{tpu_custom_call.1} parent=1 // pred_check_branch
      %451 = sbr.rel (0) target = $region25
    $region24: #{tpu_custom_call.1} parent=1 // pred_region
      _
    $region25: #{tpu_custom_call.1} parent=1 // pred_fallthru
      _
    // Predicated region
    $region26: #{tpu_custom_call.1} parent=1 // pred_check
      _
    $region27: #{tpu_custom_call.1} parent=1 // pred_check_branch
      %453 = sbr.rel (0) target = $region29
    $region28: #{tpu_custom_call.1} parent=1 // pred_region
      %454 = dma.done [#allocation4], 256
    $region29: #{tpu_custom_call.1} parent=1 // pred_fallthru
      _
    // Predicated region
    $region30: #{tpu_custom_call.1} parent=1 // pred_check
      _
    $region31: #{tpu_custom_call.1} parent=1 // pred_check_branch
      %456 = sbr.rel (0) target = $region33
    $region32: #{tpu_custom_call.1} parent=1 // pred_region
      _
    $region33: #{tpu_custom_call.1} parent=1 // pred_fallthru
      _
    %457 = vsyncpa [#allocation4], 1

</llo_original>
